<compile_context>
chip_gen: v5e
topology: v5e:2x2
jax: 0.10.0
libtpu: 0.0.40
codegen_flags: <defaults>
</compile_context>

<pallas_src>
import functools

import jax
import jax.numpy as jnp
from jax.experimental import pallas as pl
from jax.experimental.pallas import tpu as pltpu


def ff_layer_kernel(x_ref, gamma_ref, beta_ref, w1_ref, w2_ref, o_ref,
                    y_ref, acc_ref, *, eps):
    """Processes one (tm, D) row tile x one tf-wide d_ff slice.

    grid = (M // tm, F // tf); axis 1 (d_ff) is the reduction axis.
    """
    f = pl.program_id(1)

    # LayerNorm once per row tile: stash normalized rows, zero the accumulator.
    @pl.when(f == 0)
    def _():
        x = x_ref[...].astype(jnp.float32)
        # Fused single-pass mean / biased variance (matches torch.nn.LayerNorm).
        mean = jnp.mean(x, axis=-1, keepdims=True)
        mean_sq = jnp.mean(x * x, axis=-1, keepdims=True)
        var = jnp.maximum(mean_sq - mean * mean, 0.0)
        xn = (x - mean) * jax.lax.rsqrt(var + eps)
        y = xn * gamma_ref[...].astype(jnp.float32) + beta_ref[...].astype(jnp.float32)
        y_ref[...] = y.astype(y_ref.dtype)
        acc_ref[...] = jnp.zeros_like(acc_ref)

    # wi slice -> relu -> partial wo matmul, accumulated in f32.
    h = jnp.dot(y_ref[...], w1_ref[...], preferred_element_type=jnp.float32)
    h = jnp.maximum(h, 0.0)
    # TODO(synk): dropout is identity in eval mode; training-mode dropout would
    # draw pltpu.prng_random_bits on h (and on the residual branch) here.
    acc_ref[...] += jnp.dot(h.astype(w2_ref.dtype), w2_ref[...],
                            preferred_element_type=jnp.float32)

    # Residual add + store on the last d_ff step.
    @pl.when(f == pl.num_programs(1) - 1)
    def _():
        o_ref[...] = (x_ref[...].astype(jnp.float32) + acc_ref[...]).astype(o_ref.dtype)


def _round_up(x, m):
    return ((x + m - 1) // m) * m


def ff_layer(x, gamma, beta, w1t, w2t, *, eps=1e-6, tm=256, tf=512):
    """FFLayer forward.

    x:            [B, S, D]    hidden states.
    gamma, beta:  [D]          LayerNorm scale / shift.
    w1t:          [D, F]       wi weight, already in (in, out) layout.
    w2t:          [F, D]       wo weight, already in (in, out) layout.

    Weights are used in the dtype they are passed in (pass bf16 to feed the
    MXU at bf16 rate); accumulation is always f32.
    """
    B, S, D = x.shape
    Dw, F = w1t.shape
    assert Dw == D and w2t.shape == (F, D)

    M = B * S
    x2 = x.reshape(M, D)

    # Row tile: multiple of 8 (f32 sublane), never larger than (padded) M.
    tm = max(8, min(int(tm), _round_up(M, 8)))
    Mp = _round_up(M, tm)
    if Mp != M:
        x2 = jnp.pad(x2, ((0, Mp - M), (0, 0)))

    # d_ff tile: whole F, or a lane-aligned multiple of 128.
    if tf >= F:
        tf = F
    else:
        tf = max(128, (int(tf) // 128) * 128)
    Fp = _round_up(F, tf)
    if Fp != F:
        # Zero-pad the hidden dim: padded columns give relu(0)=0 -> no effect.
        w1t = jnp.pad(w1t, ((0, 0), (0, Fp - F)))
        w2t = jnp.pad(w2t, ((0, Fp - F), (0, 0)))

    gamma2 = gamma.reshape(1, D)
    beta2 = beta.reshape(1, D)

    compute_dtype = w1t.dtype
    grid = (Mp // tm, Fp // tf)

    # Rough VMEM budget (double-buffered streams + scratch). Raise the scoped
    # limit above the 32 MiB default when needed, but stay v7x-safe (64 MiB).
    wbytes = jnp.dtype(compute_dtype).itemsize
    est = (2 * tm * D * x2.dtype.itemsize            # x row tile (double-buffered)
           + 2 * tm * D * x.dtype.itemsize           # out row tile
           + 2 * (D * tf + tf * D) * wbytes          # W1 / W2 slices
           + tm * D * wbytes                         # cached LayerNorm(y)
           + tm * tf * 4                             # hidden tile h
           + tm * D * 4)                             # f32 accumulator
    vmem_limit = int(min(max(2 * est, 32 * 1024 * 1024), 64 * 1024 * 1024))

    kernel = functools.partial(ff_layer_kernel, eps=eps)

    out = pl.pallas_call(
        kernel,
        out_shape=jax.ShapeDtypeStruct((Mp, D), x.dtype),
        grid_spec=pltpu.PrefetchScalarGridSpec(
            num_scalar_prefetch=0,
            grid=grid,
            in_specs=[
                pl.BlockSpec((tm, D), lambda i, f: (i, 0)),   # x rows
                pl.BlockSpec((1, D), lambda i, f: (0, 0)),    # gamma
                pl.BlockSpec((1, D), lambda i, f: (0, 0)),    # beta
                pl.BlockSpec((D, tf), lambda i, f: (0, f)),   # W1^T slice
                pl.BlockSpec((tf, D), lambda i, f: (f, 0)),   # W2^T slice
            ],
            out_specs=pl.BlockSpec((tm, D), lambda i, f: (i, 0)),
            scratch_shapes=[
                pltpu.VMEM((tm, D), compute_dtype),   # normalized rows y
                pltpu.VMEM((tm, D), jnp.float32),     # f32 accumulator
            ],
        ),
        compiler_params=pltpu.CompilerParams(
            dimension_semantics=("parallel", "arbitrary"),
            vmem_limit_bytes=vmem_limit),
    )(x2, gamma2, beta2, w1t, w2t)

    return out[:M].reshape(B, S, D)


def _reference(x, gamma, beta, w1, w2, eps):
    """Pure-JAX reference, torch weight layout: w1 (F, D), w2 (D, F)."""
    xf = x.astype(jnp.float32)
    mean = jnp.mean(xf, axis=-1, keepdims=True)
    var = jnp.mean((xf - mean) ** 2, axis=-1, keepdims=True)
    y = (xf - mean) * jax.lax.rsqrt(var + eps) * gamma + beta
    h = jnp.maximum(y @ w1.T.astype(jnp.float32), 0.0)
    f = h @ w2.T.astype(jnp.float32)
    return (xf + f).astype(x.dtype)


if __name__ == "__main__":
    eps = 1e-6
    key = jax.random.PRNGKey(0)

    # --- Test 1: small config (batch=2, seq=8, d_model=32, d_ff=64), f32. ---
    B, S, D, F = 2, 8, 32, 64
    kx, kg, kb, k1, k2 = jax.random.split(key, 5)
    x = jax.random.normal(kx, (B, S, D), dtype=jnp.float32)
    gamma = 1.0 + 0.1 * jax.random.normal(kg, (D,), dtype=jnp.float32)
    beta = 0.1 * jax.random.normal(kb, (D,), dtype=jnp.float32)
    w1 = jax.random.normal(k1, (F, D), dtype=jnp.float32) * (1.0 / jnp.sqrt(D))
    w2 = jax.random.normal(k2, (D, F), dtype=jnp.float32) * (1.0 / jnp.sqrt(F))

    # Transpose once, outside the kernel (kernel consumes (in, out) layout).
    w1t, w2t = jnp.transpose(w1), jnp.transpose(w2)

    out = jax.block_until_ready(ff_layer(x, gamma, beta, w1t, w2t, eps=eps))
    ref = _reference(x, gamma, beta, w1, w2, eps)
    assert out.shape == (B, S, D)
    assert jnp.allclose(out, ref, atol=1e-4, rtol=1e-4), "f32 mismatch vs reference"

    # --- Test 2: larger config exercising row + d_ff tiling (f32, exact). ---
    B2, S2, D2, F2 = 2, 128, 256, 512
    kx2, k12, k22 = jax.random.split(jax.random.PRNGKey(1), 3)
    x2 = jax.random.normal(kx2, (B2, S2, D2), dtype=jnp.float32)
    g2 = jnp.ones((D2,), jnp.float32)
    b2 = jnp.zeros((D2,), jnp.float32)
    w1b = jax.random.normal(k12, (F2, D2), dtype=jnp.float32) * (1.0 / jnp.sqrt(D2))
    w2b = jax.random.normal(k22, (D2, F2), dtype=jnp.float32) * (1.0 / jnp.sqrt(F2))
    out2 = jax.block_until_ready(
        ff_layer(x2, g2, b2, jnp.transpose(w1b), jnp.transpose(w2b),
                 eps=eps, tm=64, tf=128))
    ref2 = _reference(x2, g2, b2, w1b, w2b, eps)
    assert jnp.allclose(out2, ref2, atol=2e-3, rtol=2e-3), "tiled f32 mismatch"

    # --- Test 3: bf16 weights feeding the MXU (looser tolerance). ---
    out_bf16 = jax.block_until_ready(
        ff_layer(x, gamma, beta,
                 w1t.astype(jnp.bfloat16), w2t.astype(jnp.bfloat16), eps=eps))
    assert jnp.allclose(out_bf16, ref, atol=5e-2, rtol=5e-2), "bf16 mismatch"

    print("KERNEL_OK")
</pallas_src>

<mosaic_0001>
module attributes {stable_mosaic.version = 11 : i64} {
  func.func @ff_layer_kernel(%arg0: i32, %arg1: i32, %arg2: memref<16x32xf32, #tpu.memory_space<vmem>>, %arg3: memref<1x32xf32, #tpu.memory_space<vmem>>, %arg4: memref<1x32xf32, #tpu.memory_space<vmem>>, %arg5: memref<32x64xf32, #tpu.memory_space<vmem>>, %arg6: memref<64x32xf32, #tpu.memory_space<vmem>>, %arg7: memref<16x32xf32, #tpu.memory_space<vmem>>, %arg8: memref<16x32xf32, #tpu.memory_space<vmem>>, %arg9: memref<16x32xf32, #tpu.memory_space<vmem>>) attributes {dimension_semantics = [#tpu.dimension_semantics<parallel>, #tpu.dimension_semantics<arbitrary>], iteration_bounds = array<i64: 1, 1>, scalar_prefetch = 0 : i64, scratch_operands = 2 : i64, tpu.core_type = #tpu.core_type<tc>, window_params = [{transform_indices = @transform_0, window_bounds = array<i64: 16, 32>}, {pipeline_mode = #tpu.pipeline_mode<synchronous>, transform_indices = @transform_1, window_bounds = array<i64: 1, 32>}, {pipeline_mode = #tpu.pipeline_mode<synchronous>, transform_indices = @transform_2, window_bounds = array<i64: 1, 32>}, {transform_indices = @transform_3, window_bounds = array<i64: 32, 64>}, {transform_indices = @transform_4, window_bounds = array<i64: 64, 32>}, {transform_indices = @transform_5, window_bounds = array<i64: 16, 32>}]} {
    %c0_i32 = arith.constant 0 : i32
    %0 = arith.cmpi eq, %arg1, %c0_i32 : i32
    %1 = arith.extui %0 : i1 to i32
    %c0_i32_0 = arith.constant 0 : i32
    %2 = arith.cmpi ne, %1, %c0_i32_0 : i32
    scf.if %2 {
      %c0_14 = arith.constant 0 : index
      %c0_15 = arith.constant 0 : index
      %16 = vector.load %arg2[%c0_14, %c0_15] : memref<16x32xf32, #tpu.memory_space<vmem>>, vector<16x32xf32>
      %cst_16 = arith.constant dense<0.000000e+00> : vector<16xf32>
      %17 = vector.multi_reduction <add>, %16, %cst_16 [1] : vector<16x32xf32> to vector<16xf32>
      %18 = vector.shape_cast %17 : vector<16xf32> to vector<16x1xf32>
      %cst_17 = arith.constant 3.200000e+01 : f32
      %19 = vector.broadcast %cst_17 : f32 to vector<16x1xf32>
      %20 = arith.divf %18, %19 : vector<16x1xf32>
      %21 = arith.mulf %16, %16 : vector<16x32xf32>
      %cst_18 = arith.constant dense<0.000000e+00> : vector<16xf32>
      %22 = vector.multi_reduction <add>, %21, %cst_18 [1] : vector<16x32xf32> to vector<16xf32>
      %23 = vector.shape_cast %22 : vector<16xf32> to vector<16x1xf32>
      %cst_19 = arith.constant 3.200000e+01 : f32
      %24 = vector.broadcast %cst_19 : f32 to vector<16x1xf32>
      %25 = arith.divf %23, %24 : vector<16x1xf32>
      %26 = arith.mulf %20, %20 : vector<16x1xf32>
      %27 = arith.subf %25, %26 : vector<16x1xf32>
      %cst_20 = arith.constant 0.000000e+00 : f32
      %28 = vector.broadcast %cst_20 : f32 to vector<16x1xf32>
      %29 = arith.maximumf %27, %28 : vector<16x1xf32>
      %30 = vector.broadcast %20 : vector<16x1xf32> to vector<16x32xf32>
      %31 = arith.subf %16, %30 : vector<16x32xf32>
      %cst_21 = arith.constant 9.99999997E-7 : f32
      %32 = vector.broadcast %cst_21 : f32 to vector<16x1xf32>
      %33 = arith.addf %29, %32 : vector<16x1xf32>
      %34 = math.rsqrt %33 : vector<16x1xf32>
      %35 = vector.broadcast %34 : vector<16x1xf32> to vector<16x32xf32>
      %36 = arith.mulf %31, %35 : vector<16x32xf32>
      %c0_22 = arith.constant 0 : index
      %c0_23 = arith.constant 0 : index
      %37 = vector.load %arg3[%c0_22, %c0_23] : memref<1x32xf32, #tpu.memory_space<vmem>>, vector<1x32xf32>
      %38 = vector.broadcast %37 : vector<1x32xf32> to vector<16x32xf32>
      %39 = arith.mulf %36, %38 : vector<16x32xf32>
      %c0_24 = arith.constant 0 : index
      %c0_25 = arith.constant 0 : index
      %40 = vector.load %arg4[%c0_24, %c0_25] : memref<1x32xf32, #tpu.memory_space<vmem>>, vector<1x32xf32>
      %41 = vector.broadcast %40 : vector<1x32xf32> to vector<16x32xf32>
      %42 = arith.addf %39, %41 : vector<16x32xf32>
      %c0_26 = arith.constant 0 : index
      %c0_27 = arith.constant 0 : index
      %43 = vector.load %arg8[%c0_26, %c0_27] : memref<16x32xf32, #tpu.memory_space<vmem>>, vector<16x32xf32>
      tpu.vector_store %arg8[%c0_26, %c0_27], %42 {strides = array<i32>} : memref<16x32xf32, #tpu.memory_space<vmem>>, vector<16x32xf32>,
      %cst_28 = arith.constant 0.000000e+00 : f32
      %44 = vector.broadcast %cst_28 : f32 to vector<16x32xf32>
      %c0_29 = arith.constant 0 : index
      %c0_30 = arith.constant 0 : index
      %45 = vector.load %arg9[%c0_29, %c0_30] : memref<16x32xf32, #tpu.memory_space<vmem>>, vector<16x32xf32>
      tpu.vector_store %arg9[%c0_29, %c0_30], %44 {strides = array<i32>} : memref<16x32xf32, #tpu.memory_space<vmem>>, vector<16x32xf32>,
    } else {
    }
    %c0 = arith.constant 0 : index
    %c0_1 = arith.constant 0 : index
    %3 = vector.load %arg8[%c0, %c0_1] : memref<16x32xf32, #tpu.memory_space<vmem>>, vector<16x32xf32>
    %c0_2 = arith.constant 0 : index
    %c0_3 = arith.constant 0 : index
    %4 = vector.load %arg5[%c0_2, %c0_3] : memref<32x64xf32, #tpu.memory_space<vmem>>, vector<32x64xf32>
    %cst = arith.constant dense<0.000000e+00> : vector<16x64xf32>
    %5 = tpu.matmul %3, %4, %cst {dimension_numbers = #tpu.dot_dimension_numbers<[1], [0], [0], [1], [0, 0, 1, 1], [], []>} : vector<16x32xf32>, vector<32x64xf32>, vector<16x64xf32> -> vector<16x64xf32>
    %cst_4 = arith.constant 0.000000e+00 : f32
    %6 = vector.broadcast %cst_4 : f32 to vector<16x64xf32>
    %7 = arith.maximumf %5, %6 : vector<16x64xf32>
    %c0_5 = arith.constant 0 : index
    %c0_6 = arith.constant 0 : index
    %8 = vector.load %arg9[%c0_5, %c0_6] : memref<16x32xf32, #tpu.memory_space<vmem>>, vector<16x32xf32>
    %c0_7 = arith.constant 0 : index
    %c0_8 = arith.constant 0 : index
    %9 = vector.load %arg6[%c0_7, %c0_8] : memref<64x32xf32, #tpu.memory_space<vmem>>, vector<64x32xf32>
    %cst_9 = arith.constant dense<0.000000e+00> : vector<16x32xf32>
    %10 = tpu.matmul %7, %9, %cst_9 {dimension_numbers = #tpu.dot_dimension_numbers<[1], [0], [0], [1], [0, 0, 1, 1], [], []>} : vector<16x64xf32>, vector<64x32xf32>, vector<16x32xf32> -> vector<16x32xf32>
    %11 = arith.addf %8, %10 : vector<16x32xf32>
    %c0_10 = arith.constant 0 : index
    %c0_11 = arith.constant 0 : index
    %12 = vector.load %arg9[%c0_10, %c0_11] : memref<16x32xf32, #tpu.memory_space<vmem>>, vector<16x32xf32>
    tpu.vector_store %arg9[%c0_10, %c0_11], %11 {strides = array<i32>} : memref<16x32xf32, #tpu.memory_space<vmem>>, vector<16x32xf32>,
    %c0_i32_12 = arith.constant 0 : i32
    %13 = arith.cmpi eq, %arg1, %c0_i32_12 : i32
    %14 = arith.extui %13 : i1 to i32
    %c0_i32_13 = arith.constant 0 : i32
    %15 = arith.cmpi ne, %14, %c0_i32_13 : i32
    scf.if %15 {
      %c0_14 = arith.constant 0 : index
      %c0_15 = arith.constant 0 : index
      %16 = vector.load %arg2[%c0_14, %c0_15] : memref<16x32xf32, #tpu.memory_space<vmem>>, vector<16x32xf32>
      %c0_16 = arith.constant 0 : index
      %c0_17 = arith.constant 0 : index
      %17 = vector.load %arg9[%c0_16, %c0_17] : memref<16x32xf32, #tpu.memory_space<vmem>>, vector<16x32xf32>
      %18 = arith.addf %16, %17 : vector<16x32xf32>
      %c0_18 = arith.constant 0 : index
      %c0_19 = arith.constant 0 : index
      %19 = vector.load %arg7[%c0_18, %c0_19] : memref<16x32xf32, #tpu.memory_space<vmem>>, vector<16x32xf32>
      tpu.vector_store %arg7[%c0_18, %c0_19], %18 {strides = array<i32>} : memref<16x32xf32, #tpu.memory_space<vmem>>, vector<16x32xf32>,
    } else {
    }
    return
  }
  func.func @transform_0(%arg0: i32, %arg1: i32) -> (i32, i32) {
    %c0_i32 = arith.constant 0 : i32
    %c0_i32_0 = arith.constant 0 : i32
    return %arg0, %c0_i32 : i32, i32
  }
  func.func @transform_1(%arg0: i32, %arg1: i32) -> (i32, i32) {
    %c0_i32 = arith.constant 0 : i32
    %c0_i32_0 = arith.constant 0 : i32
    %c0_i32_1 = arith.constant 0 : i32
    return %c0_i32, %c0_i32_0 : i32, i32
  }
  func.func @transform_2(%arg0: i32, %arg1: i32) -> (i32, i32) {
    %c0_i32 = arith.constant 0 : i32
    %c0_i32_0 = arith.constant 0 : i32
    %c0_i32_1 = arith.constant 0 : i32
    return %c0_i32, %c0_i32_0 : i32, i32
  }
  func.func @transform_3(%arg0: i32, %arg1: i32) -> (i32, i32) {
    %c0_i32 = arith.constant 0 : i32
    %c0_i32_0 = arith.constant 0 : i32
    return %c0_i32, %arg1 : i32, i32
  }
  func.func @transform_4(%arg0: i32, %arg1: i32) -> (i32, i32) {
    %c0_i32 = arith.constant 0 : i32
    %c0_i32_0 = arith.constant 0 : i32
    return %arg1, %c0_i32 : i32, i32
  }
  func.func @transform_5(%arg0: i32, %arg1: i32) -> (i32, i32) {
    %c0_i32 = arith.constant 0 : i32
    %c0_i32_0 = arith.constant 0 : i32
    return %arg0, %c0_i32 : i32, i32
  }
}

</mosaic_0001>

<llo_original>
// kernel: tpu_custom_call.1
$region0: #{tpu_custom_call.1}
  #allocation0 [shape = 'u32[]', space=smem, size = 0x4, offset = 0x4, fixed_abs, tag = 'smem constant byte address 0x4 - core index']
  #allocation1 [shape = 'u32[72,128]{1,0:T(1,128)}', space=vmem, size = 0x9000, scoped, tag = 'internal scratch']
  #allocation2 [shape = 'f32[16,32]{1,0:T(8,128)}', space=vmem, size = 0x2000, scoped, tag = 'scratch operand']
  #allocation3 [shape = 'f32[16,32]{1,0:T(8,128)}', space=vmem, size = 0x2000, scoped, tag = 'scratch operand']
  %s0 = inlined_call_operand.vmem [shape: f32[16,32], index: 0, kind: input, shape index: {}]
  %s1 = inlined_call_operand.vmem [shape: f32[1,32], index: 1, kind: input, shape index: {}]
  %s2 = inlined_call_operand.vmem [shape: f32[1,32], index: 2, kind: input, shape index: {}]
  %s3 = inlined_call_operand.vmem [shape: f32[32,64], index: 3, kind: input, shape index: {}]
  %s4 = inlined_call_operand.vmem [shape: f32[64,32], index: 4, kind: input, shape index: {}]
  %s5 = inlined_call_operand.hbm [shape: f32[16,32], index: 5, kind: output, shape index: {}]
  %s6 = sld [smem:[#allocation0]]
  $region38: #{tpu_custom_call.1} parent=0
    _
  %s8 = ssub.s32 1, %s6
  %s9 = scalar_select 0, %s8, %s6
  $region1: #{tpu_custom_call.1} parent=0
    #allocation4 [shape = 'u8[8192]{0}', space=vmem, size = 0x2000, scoped, tag = 'output window, operand 0, single buffered']
    #allocation5 [shape = 's32[1]{0}', space=sflag, size = 0x4, scoped, tag = 'scoped memory for tpu_custom_call.1']
    %10 = vsyncpa [#allocation5], 0
    // Predicated region
    $region2: #{tpu_custom_call.1} parent=1 // pred_check
      _
    $region3: #{tpu_custom_call.1} parent=1 // pred_check_branch
      %12 = sbr.rel (0) target = $region5
    $region4: #{tpu_custom_call.1} parent=1 // pred_region
      _
    $region5: #{tpu_custom_call.1} parent=1 // pred_fallthru
      _
    // Predicated region
    $region6: #{tpu_custom_call.1} parent=1 // pred_check
      _
    $region7: #{tpu_custom_call.1} parent=1 // pred_check_branch
      %14 = sbr.rel (0) target = $region9
    $region8: #{tpu_custom_call.1} parent=1 // pred_region
      _
    $region9: #{tpu_custom_call.1} parent=1 // pred_fallthru
      _
    // Predicated region
    $region10: #{tpu_custom_call.1} parent=1 // pred_check
      _
    $region11: #{tpu_custom_call.1} parent=1 // pred_check_branch
      %16 = sbr.rel (0) target = $region13
    $region12: #{tpu_custom_call.1} parent=1 // pred_region
      _
    $region13: #{tpu_custom_call.1} parent=1 // pred_fallthru
      _
    // Predicated region
    $region14: #{tpu_custom_call.1} parent=1 // pred_check
      _
    $region15: #{tpu_custom_call.1} parent=1 // pred_check_branch
      %18 = sbr.rel (0) target = $region17
    $region16: #{tpu_custom_call.1} parent=1 // pred_region
      _
    $region17: #{tpu_custom_call.1} parent=1 // pred_fallthru
      _
    // Predicated region
    $region18: #{tpu_custom_call.1} parent=1 // pred_check
      _
    $region19: #{tpu_custom_call.1} parent=1 // pred_check_branch
      %20 = sbr.rel (0) target = $region21
    $region20: #{tpu_custom_call.1} parent=1 // pred_region
      _
    $region21: #{tpu_custom_call.1} parent=1 // pred_fallthru
      _
    %p21 = scmp.eq.s32.totalorder 0, 0
    // Predicated region
    $region22: #{tpu_custom_call.1} parent=1 // pred_check
      %p22 = pneg %p21
    $region23: #{tpu_custom_call.1} parent=1 // pred_check_branch
      %24 = sbr.rel (%p22) target = $region25
    $region24: #{tpu_custom_call.1} parent=1 // pred_region
      %v25 = vld [vmem:[%s0] sm:$0xff]
      %v26 = vld [vmem:[%s0 + $0x8] sm:$0xff]
      %vm27 = vcmask 261120
      %v28 = vsel %vm27, %v25, 0.0
      %29 = vadd.xlane.f32.xlu0 %v28
      %v30 = vpop.xlane.xlu0 %29
      %v31 = vsel %vm27, %v26, 0.0
      %32 = vadd.xlane.f32.xlu0 %v31
      %v33 = vpop.xlane.xlu0 %32
      %v34 = vrcp.pop 32.0
      %v35 = vmul.f32 32.0, %v34
      %v36 = vsub.f32 1.0, %v35
      %v37 = vmul.f32 %v34, %v36
      %v38 = vadd.f32 %v34, %v37
      %vm39 = vweird.f32 %v34
      %v40 = vsel %vm39, %v34, %v38
      %v41 = vmul.f32 %v30, %v40
      %v42 = vmul.f32 %v33, %v40
      %v43 = vmul.f32 %v25, %v25
      %v44 = vmul.f32 %v26, %v26
      %v45 = vsel %vm27, %v43, 0.0
      %46 = vadd.xlane.f32.xlu0 %v45
      %v47 = vpop.xlane.xlu0 %46
      %v48 = vsel %vm27, %v44, 0.0
      %49 = vadd.xlane.f32.xlu0 %v48
      %v50 = vpop.xlane.xlu0 %49
      %v51 = vmul.f32 %v47, %v40
      %v52 = vmul.f32 %v50, %v40
      %v53 = vmul.f32 %v41, %v41
      %v54 = vmul.f32 %v42, %v42
      %v55 = vsub.f32 %v51, %v53
      %v56 = vsub.f32 %v52, %v54
      %v57 = vmax.f32 %v55, 0.0
      %v58 = vmax.f32 %v56, 0.0
      %v59 = vsub.f32 %v25, %v41
      %v60 = vsub.f32 %v26, %v42
      %v61 = vadd.f32 %v57, 1e-06
      %v62 = vadd.f32 %v58, 1e-06
      %v63 = vrsqrt.pop %v61
      %v64 = vmul.f32 %v63, %v61
      %v65 = vmul.f32 %v64, %v63
      %v66 = vmul.f32 0.5, %v65
      %v67 = vsub.f32 1.5, %v66
      %v68 = vmul.f32 %v63, %v67
      %vm69 = vweird.f32 %v61
      %vm70 = vweird.f32 %v63
      %vm71 = vmor %vm69, %vm70
      %v72 = vsel %vm71, %v63, %v68
      %v73 = vrsqrt.pop %v62
      %v74 = vmul.f32 %v73, %v62
      %v75 = vmul.f32 %v74, %v73
      %v76 = vmul.f32 0.5, %v75
      %v77 = vsub.f32 1.5, %v76
      %v78 = vmul.f32 %v73, %v77
      %vm79 = vweird.f32 %v62
      %vm80 = vweird.f32 %v73
      %vm81 = vmor %vm79, %vm80
      %v82 = vsel %vm81, %v73, %v78
      %v83 = vmul.f32 %v59, %v72
      %v84 = vmul.f32 %v60, %v82
      %v85 = vld [vmem:[%s1] sm:$0x1]
      %v87 = vperm.slane %v85, 0
      %v89 = vmul.f32 %v83, %v87
      %v90 = vmul.f32 %v84, %v87
      %v91 = vld [vmem:[%s2] sm:$0x1]
      %v93 = vperm.slane %v91, 0
      %v95 = vadd.f32 %v89, %v93
      %v96 = vadd.f32 %v90, %v93
      %97 = vst.msk [vmem:[#allocation2] sm:$0xff] %vm27, %v95
      %98 = vst.msk [vmem:[#allocation2 + $0x8] sm:$0xff] %vm27, %v96
      %99 = vst.msk [vmem:[#allocation3] sm:$0xff] %vm27, 0.0
      %100 = vst.msk [vmem:[#allocation3 + $0x8] sm:$0xff] %vm27, 0.0
    $region25: #{tpu_custom_call.1} parent=1 // pred_fallthru
      _
    %v101 = vld [vmem:[#allocation2] sm:$0xff]
    %v102 = vld [vmem:[#allocation2 + $0x8] sm:$0xff]
    %v103 = vld [vmem:[%s3] sm:$0xff]
    %v104 = vld [vmem:[%s3 + $0x8] sm:$0xff]
    %v105 = vld [vmem:[%s3 + $0x10] sm:$0xff]
    %v106 = vld [vmem:[%s3 + $0x18] sm:$0xff]
    %vm107 = vcmask 261120
    %v109 = vsel %vm107, %v101, 0
    %v112 = vsel %vm107, %v102, 0
    %114 = vmatpush.msra.mxu0 0.0
    %115 = vmatpush.msra.mxu0 0.0
    %116 = vmatpush.msra.mxu0 0.0
    %117 = vmatpush.msra.mxu0 0.0
    %118 = vmatpush.msra.mxu0 0.0
    %119 = vmatpush.msra.mxu0 0.0
    %120 = vmatpush.msra.mxu0 0.0
    %121 = vmatpush.msra.mxu0 0.0
    %122 = vmatpush.msra.mxu0 0.0
    %123 = vmatpush.msra.mxu0 0.0
    %124 = vmatpush.msra.mxu0 0.0
    %125 = vmatpush.msra.mxu0 0.0
    %126 = vmatpush.msra.mxu0 %v106
    %127 = vmatpush.msra.mxu0 %v105
    %128 = vmatpush.msra.mxu0 %v104
    %129 = vmatpush.msra.mxu0 %v103
    %130 = vmatmul.f32.gmra.mxu0 %v109
    %v131 = vpop.f32.mrf.mxu0
    %v132 = vadd.f32 0.0, %v131
    %133 = vmatmul.f32.gmra.mxu0 %v112
    %v134 = vpop.f32.mrf.mxu0
    %v135 = vadd.f32 0.0, %v134
    %136 = vdwg.mxu0
    %v137 = vmax.f32 %v132, 0.0
    %v138 = vmax.f32 %v135, 0.0
    %v139 = vld [vmem:[#allocation3] sm:$0xff]
    %v140 = vld [vmem:[#allocation3 + $0x8] sm:$0xff]
    %v141 = vld [vmem:[%s4] sm:$0xff]
    %v142 = vld [vmem:[%s4 + $0x8] sm:$0xff]
    %v143 = vld [vmem:[%s4 + $0x10] sm:$0xff]
    %v144 = vld [vmem:[%s4 + $0x18] sm:$0xff]
    %v145 = vld [vmem:[%s4 + $0x20] sm:$0xff]
    %v146 = vld [vmem:[%s4 + $0x28] sm:$0xff]
    %v147 = vld [vmem:[%s4 + $0x30] sm:$0xff]
    %v148 = vld [vmem:[%s4 + $0x38] sm:$0xff]
    %vm149 = vcmask 523264
    %v151 = vsel %vm149, %v137, 0
    %v154 = vsel %vm149, %v138, 0
    %156 = vmatpush.msra.mxu0 0.0
    %157 = vmatpush.msra.mxu0 0.0
    %158 = vmatpush.msra.mxu0 0.0
    %159 = vmatpush.msra.mxu0 0.0
    %160 = vmatpush.msra.mxu0 0.0
    %161 = vmatpush.msra.mxu0 0.0
    %162 = vmatpush.msra.mxu0 0.0
    %163 = vmatpush.msra.mxu0 0.0
    %164 = vmatpush.msra.mxu0 %v148
    %165 = vmatpush.msra.mxu0 %v147
    %166 = vmatpush.msra.mxu0 %v146
    %167 = vmatpush.msra.mxu0 %v145
    %168 = vmatpush.msra.mxu0 %v144
    %169 = vmatpush.msra.mxu0 %v143
    %170 = vmatpush.msra.mxu0 %v142
    %171 = vmatpush.msra.mxu0 %v141
    %172 = vmatmul.f32.gmra.mxu0 %v151
    %v173 = vpop.f32.mrf.mxu0
    %v174 = vadd.f32 0.0, %v173
    %175 = vmatmul.f32.gmra.mxu0 %v154
    %v176 = vpop.f32.mrf.mxu0
    %v177 = vadd.f32 0.0, %v176
    %178 = vdwg.mxu0
    %v179 = vadd.f32 %v139, %v174
    %v180 = vadd.f32 %v140, %v177
    %181 = vst.msk [vmem:[#allocation3] sm:$0xff] %vm107, %v179
    %182 = vst.msk [vmem:[#allocation3 + $0x8] sm:$0xff] %vm107, %v180
    // Predicated region
    $region26: #{tpu_custom_call.1} parent=1 // pred_check
      %p183 = pneg %p21
    $region27: #{tpu_custom_call.1} parent=1 // pred_check_branch
      %185 = sbr.rel (%p183) target = $region29
    $region28: #{tpu_custom_call.1} parent=1 // pred_region
      %v186 = vld [vmem:[%s0] sm:$0xff]
      %v187 = vld [vmem:[%s0 + $0x8] sm:$0xff]
      %v188 = vld [vmem:[#allocation3] sm:$0xff]
      %v189 = vld [vmem:[#allocation3 + $0x8] sm:$0xff]
      %v190 = vadd.f32 %v186, %v188
      %v191 = vadd.f32 %v187, %v189
      %192 = vst.msk [vmem:[#allocation4] sm:$0xff] %vm107, %v190
      %193 = vst.msk [vmem:[#allocation4 + $0x8] sm:$0xff] %vm107, %v191
    $region29: #{tpu_custom_call.1} parent=1 // pred_fallthru
      _
    // Predicated region
    $region30: #{tpu_custom_call.1} parent=1 // pred_check
      _
    $region31: #{tpu_custom_call.1} parent=1 // pred_check_branch
      %195 = sbr.rel (0) target = $region33
    $region32: #{tpu_custom_call.1} parent=1 // pred_region
      %197 = vsyncadd [#allocation5], 0
      %s198 = sshll.u32 [#allocation4], 4
      %s199 = int_to_ptr.vmem [resolvable:$true] %s198
      %s200 = sshll.u32 %s5, 4
      %s201 = int_to_ptr.hbm [resolvable:$true] %s200
      %206 = dma.vmem_to_hbm [thread:$0]  %s199, 256, %s201, [#allocation5], 128, 128, 8
    $region33: #{tpu_custom_call.1} parent=1 // pred_fallthru
      _
    // Predicated region
    $region34: #{tpu_custom_call.1} parent=1 // pred_check
      _
    $region35: #{tpu_custom_call.1} parent=1 // pred_check_branch
      %208 = sbr.rel (0) target = $region37
    $region36: #{tpu_custom_call.1} parent=1 // pred_region
      %210 = dma.done [#allocation5], 256
    $region37: #{tpu_custom_call.1} parent=1 // pred_fallthru
      _
    %211 = vsyncpa [#allocation5], 1

</llo_original>
